<compile_context>
chip_gen: v7x
topology: tpu7x:2x2x1
jax: 0.10.0
libtpu: 0.0.40
codegen_flags: <defaults>
</compile_context>

<pallas_src>
import numpy as np
import jax
import jax.numpy as jnp
from jax import lax
from jax.experimental import pallas as pl
from jax.experimental.pallas import tpu as pltpu


def _round_up(x: int, m: int) -> int:
    return ((x + m - 1) // m) * m


def _pick_tile(n: int, granule: int, cap: int) -> int:
    """Largest multiple of `granule` that divides `n` and is <= cap (granule | n)."""
    best = granule
    t = granule
    while t <= min(n, cap):
        if n % t == 0:
            best = t
        t += granule
    return best


def _vmem_capacity_bytes() -> int:
    """Per-core VMEM capacity; conservative v7x fallback (64 MiB) if unknown."""
    try:
        info = pltpu.get_tpu_info()
        cap = int(getattr(info, "vmem_capacity_bytes", 0) or 0)
        if cap > 0:
            return cap
    except Exception:
        pass
    return 64 << 20


def _make_dcl_kernel(temperature: float, tau_p: float, batch: int,
                     n_row_pad: int, tc: int, resident: bool):
    temp = float(temperature)
    tau_p = float(tau_p)
    tau_n = 1.0 - tau_p
    n_neg = 2 * batch - 2                              # self.N = 2*bs - 2
    diag_e = float(np.exp(1.0 / temp))                 # exp(<w_i,w_i>/temp), unit rows
    ng_floor = float(n_neg * np.exp(-1.0 / temp))
    # every zero-padded column adds exp(0) = 1 to each real row's sum
    const_sub = diag_e + float(n_row_pad)
    pos_coeff = -tau_p * float(n_neg)
    inv_tau_n = 1.0 / tau_n

    def kernel(w_row_ref, wt_ref, pos_ref, loss_ref, acc_ref):
        j = pl.program_id(1)

        @pl.when(j == 0)
        def _init():
            acc_ref[...] = jnp.zeros_like(acc_ref)

        if resident:
            # Full (Cp, 2B_pad) column operand lives in VMEM; slice the lane-
            # aligned chunk for this grid step (no extra HBM traffic).
            col0 = pl.multiple_of(j * tc, 128)
            wt = wt_ref[:, pl.ds(col0, tc)]
        else:
            wt = wt_ref[...]

        # (TR, TC) similarity tile on the MXU, natural NN orientation
        # (row block (TR, Cp) x column block (Cp, TC)).  The 1/temp scale is
        # already folded into the operands; f32 accumulation.
        s = lax.dot_general(
            w_row_ref[...], wt,
            dimension_numbers=(((1,), (0,)), ((), ())),
            preferred_element_type=jnp.float32,
        )
        # exp/reduce kept in f32 (v5e has no bf16 EUP/VPU).
        acc_ref[...] += jnp.sum(jnp.exp(s), axis=1, keepdims=True)

        @pl.when(j == pl.num_programs(1) - 1)
        def _finalize():
            pos = pos_ref[...]                              # (TR, 1), exact f32
            neg = acc_ref[...] - pos - const_sub            # drop diag + pos + pad cols
            ng = (pos_coeff * pos + neg) * inv_tau_n
            ng = jnp.maximum(ng, ng_floor)
            # -log(pos / (pos + Ng)) == log((pos + Ng) / pos)
            loss_ref[...] = jnp.log((pos + ng) / pos)

    return kernel


def dcl_loss(z, z_aug, temperature: float = 0.5, tau_p: float = 0.5,
             reduction: str = "mean", mxu_dtype=jnp.bfloat16,
             tile_rows=None, tile_cols=None, force_resident=None):
    """Pallas DCL forward. z, z_aug: (B, C). Matches the PyTorch DCL module."""
    B, C = z.shape
    if z_aug.shape != (B, C):
        raise ValueError("z and z_aug must have the same (B, C) shape")
    if not (0.0 <= float(tau_p) < 1.0):
        raise ValueError("tau_p must be in [0, 1); tau_p == 1 divides by tau_n = 0")
    if 1.0 / float(temperature) > 80.0:
        raise ValueError("temperature too small: exp(1/temp) would overflow float32")

    twoB = 2 * B
    inv_sqrt_temp = 1.0 / np.sqrt(float(temperature))

    # ---- cheap O(B*C) prep in plain JAX (normalize, fold temp, pad, concat) ----
    def l2norm_scaled(x):
        x = x.astype(jnp.float32)
        ssq = jnp.sum(x * x, axis=1, keepdims=True)
        # torch.nn.functional.normalize: x / max(||x||, 1e-12); fold 1/sqrt(temp)
        return x * (lax.rsqrt(jnp.maximum(ssq, 1e-24)) * inv_sqrt_temp)

    zn = l2norm_scaled(z)
    zan = l2norm_scaled(z_aug)

    # Exact positive term in f32: pos_i = exp(<zn_i, zan_i> / temp); identical
    # for row i and row i+B of the (2B, 2B) matrix.
    pos_e = jnp.exp(jnp.sum(zn * zan, axis=1, keepdims=True))        # (B, 1)
    pos_e = jnp.concatenate([pos_e, pos_e], axis=0)                  # (2B, 1)

    # Zero-pad the feature dim to a lane multiple (changes no norm / dot).
    Cp = _round_up(max(C, 1), 128)
    if Cp != C:
        zn = jnp.pad(zn, ((0, 0), (0, Cp - C)))
        zan = jnp.pad(zan, ((0, 0), (0, Cp - C)))

    compute_dtype = jnp.dtype(mxu_dtype)
    isz = compute_dtype.itemsize
    row_mult = 8 if isz == 4 else 16

    # ---- pad rows so tiles are always MXU/lane aligned (never ragged) --------
    granule = 256 if twoB > 128 else 128
    twoB_pad = _round_up(twoB, granule)
    n_row_pad = twoB_pad - twoB

    w = jnp.concatenate([zn, zan], axis=0).astype(compute_dtype)     # (2B, Cp)
    if n_row_pad:
        w = jnp.pad(w, ((0, n_row_pad), (0, 0)))
        # pos=1 for padded rows keeps finalize finite; those rows are dropped.
        pos_e = jnp.pad(pos_e, ((0, n_row_pad), (0, 0)), constant_values=1.0)
    wT = w.T                                                         # (Cp, 2B_pad), once

    # ---- VMEM-budgeted tile plan ---------------------------------------------
    vmem_cap = _vmem_capacity_bytes()
    vmem_budget = int(vmem_cap * 0.75)
    w_bytes = twoB_pad * Cp * isz

    resident = (2 * w_bytes) <= int(vmem_budget * 0.6)   # leave room for row blocks etc.
    if force_resident is not None:
        resident = bool(force_resident)

    def plan_bytes(tr_, tc_):
        col = 2 * w_bytes if resident else 2 * Cp * tc_ * isz   # (double-buffer budget)
        return (col
                + 2 * tr_ * Cp * isz        # row blocks (double buffered)
                + 2 * tr_ * tc_ * 4         # f32 s / exp intermediates headroom
                + 8 * tr_ * 4)              # pos/out blocks + (tr,1) accumulator

    tc = tile_cols if tile_cols is not None else _pick_tile(twoB_pad, granule, 512)
    tr = tile_rows if tile_rows is not None else _pick_tile(
        twoB_pad, granule, 512 if resident else 1024)
    if tile_rows is None and tr == twoB_pad and twoB_pad >= 2 * granule:
        # keep >=2 row blocks so both v7x TensorCores get work on the parallel axis
        tr = _pick_tile(twoB_pad, granule, twoB_pad // 2)
    if tile_rows is None:
        while plan_bytes(tr, tc) > vmem_budget and tr > 128:
            tr = _pick_tile(twoB_pad, 128, max(tr // 2, 128))
    if tile_cols is None:
        while plan_bytes(tr, tc) > vmem_budget and tc > 128:
            tc = _pick_tile(twoB_pad, 128, max(tc // 2, 128))

    if (twoB_pad % tr) or (twoB_pad % tc) or (tr % row_mult) or (tc % 128 and tc != twoB_pad):
        raise ValueError(f"invalid tile sizes tr={tr}, tc={tc} for padded rows {twoB_pad}")
    grid = (twoB_pad // tr, twoB_pad // tc)

    kernel = _make_dcl_kernel(temperature, tau_p, B, n_row_pad, tc, resident)

    col_spec = (pl.BlockSpec((Cp, twoB_pad), lambda i, j: (0, 0)) if resident
                else pl.BlockSpec((Cp, tc), lambda i, j: (0, j)))

    col_reads = 1 if resident else grid[0]
    cost = pl.CostEstimate(
        flops=int(2 * twoB_pad * twoB_pad * Cp),
        transcendentals=int(twoB_pad * twoB_pad),
        bytes_accessed=int((1 + col_reads) * twoB_pad * Cp * isz + 2 * twoB_pad * 4),
    )

    loss_rows = pl.pallas_call(
        kernel,
        out_shape=jax.ShapeDtypeStruct((twoB_pad, 1), jnp.float32),
        grid_spec=pltpu.PrefetchScalarGridSpec(
            num_scalar_prefetch=0,
            grid=grid,
            in_specs=[
                pl.BlockSpec((tr, Cp), lambda i, j: (i, 0)),   # row block of w
                col_spec,                                       # column operand (wT)
                pl.BlockSpec((tr, 1), lambda i, j: (i, 0)),     # exact pos term
            ],
            out_specs=pl.BlockSpec((tr, 1), lambda i, j: (i, 0)),
            scratch_shapes=[pltpu.VMEM((tr, 1), jnp.float32)],
        ),
        compiler_params=pltpu.CompilerParams(
            dimension_semantics=("parallel", "arbitrary"),
            vmem_limit_bytes=int(vmem_budget)),
        cost_estimate=cost,
    )(w, wT, pos_e)

    loss = loss_rows[:twoB, 0]
    if reduction == "mean":
        return jnp.mean(loss)
    return loss


def dcl_loss_ref(z, z_aug, temperature=0.5, tau_p=0.5):
    """Pure-JAX reference mirroring the PyTorch module (masks and all)."""
    temp = temperature
    tau_n = 1.0 - tau_p
    B = z.shape[0]
    N = 2 * B - 2

    def l2norm(x):
        return x / jnp.maximum(jnp.linalg.norm(x, axis=1, keepdims=True), 1e-12)

    w = jnp.concatenate([l2norm(z), l2norm(z_aug)], axis=0)
    e = jnp.exp(w @ w.T / temp)
    idx = jnp.arange(2 * B)
    aug = (idx[None, :] == ((idx[:, None] + B) % (2 * B))).astype(jnp.float32)
    negm = (1.0 - aug) * (1.0 - jnp.eye(2 * B))
    pos = jnp.sum(e * aug, axis=1)
    neg = jnp.sum(e * negm, axis=1)
    Ng = jnp.maximum((-tau_p * N * pos + neg) / tau_n, N * np.e ** (-1.0 / temp))
    return jnp.mean(-jnp.log(pos / (pos + Ng)))


if __name__ == "__main__":
    key = jax.random.PRNGKey(0)
    k1, k2, k3, k4 = jax.random.split(key, 4)

    # Case 1: small batch (single-tile, resident column), default bf16 MXU path.
    B1, C1 = 16, 32
    z1 = jax.random.normal(k1, (B1, C1), dtype=jnp.float32)
    za1 = z1 + 0.1 * jax.random.normal(k2, (B1, C1), dtype=jnp.float32)
    ref1 = dcl_loss_ref(z1, za1, temperature=0.5, tau_p=0.5)
    out1 = jax.block_until_ready(dcl_loss(z1, za1, temperature=0.5, tau_p=0.5))
    assert jnp.allclose(out1, ref1, rtol=3e-2, atol=3e-3), (out1, ref1)

    # Case 2: 2B = 320 is not tile-aligned -> exercises row padding (to 512),
    # multi-block grids, and both column-operand paths.
    B2, C2 = 160, 48
    z2 = jax.random.normal(k3, (B2, C2), dtype=jnp.float32)
    za2 = z2 + 0.1 * jax.random.normal(k4, (B2, C2), dtype=jnp.float32)
    ref2 = dcl_loss_ref(z2, za2, temperature=0.5, tau_p=0.5)

    # 2a) f32 MXU inputs, forced tiled (non-resident) column path with small
    #     tiles -> exercises the cross-column accumulator; tight tolerance.
    out2a = jax.block_until_ready(
        dcl_loss(z2, za2, mxu_dtype=jnp.float32,
                 tile_rows=128, tile_cols=128, force_resident=False))
    assert jnp.allclose(out2a, ref2, rtol=5e-5, atol=5e-5), (out2a, ref2)

    # 2b) default bf16 fast path with a forced smaller column chunk ->
    #     exercises in-kernel pl.ds slicing of the VMEM-resident column buffer.
    out2b = jax.block_until_ready(dcl_loss(z2, za2, tile_cols=256))
    assert jnp.allclose(out2b, ref2, rtol=3e-2, atol=3e-2), (out2b, ref2)

    # 2c) fully default plan.
    out2c = jax.block_until_ready(dcl_loss(z2, za2))
    assert jnp.allclose(out2c, ref2, rtol=3e-2, atol=3e-2), (out2c, ref2)

    print("KERNEL_OK")
</pallas_src>

<mosaic_0001>
module attributes {stable_mosaic.version = 11 : i64} {
  func.func @kernel(%arg0: i32, %arg1: i32, %arg2: memref<128x128xbf16, #tpu.memory_space<vmem>>, %arg3: memref<128x128xbf16, #tpu.memory_space<vmem>>, %arg4: memref<128x1xf32, #tpu.memory_space<vmem>>, %arg5: memref<128x1xf32, #tpu.memory_space<vmem>>, %arg6: memref<128x1xf32, #tpu.memory_space<vmem>>) attributes {dimension_semantics = [#tpu.dimension_semantics<parallel>, #tpu.dimension_semantics<arbitrary>], iteration_bounds = array<i64: 1, 1>, scalar_prefetch = 0 : i64, scratch_operands = 1 : i64, tpu.core_type = #tpu.core_type<tc>, window_params = [{transform_indices = @transform_0, window_bounds = array<i64: 128, 128>}, {pipeline_mode = #tpu.pipeline_mode<synchronous>, transform_indices = @transform_1, window_bounds = array<i64: 128, 128>}, {transform_indices = @transform_2, window_bounds = array<i64: 128, 1>}, {transform_indices = @transform_3, window_bounds = array<i64: 128, 1>}]} {
    %c0_i32 = arith.constant 0 : i32
    %0 = arith.cmpi eq, %arg1, %c0_i32 : i32
    %1 = arith.extui %0 : i1 to i32
    %c0_i32_0 = arith.constant 0 : i32
    %2 = arith.cmpi ne, %1, %c0_i32_0 : i32
    scf.if %2 {
      %cst_10 = arith.constant 0.000000e+00 : f32
      %18 = vector.broadcast %cst_10 : f32 to vector<128x1xf32>
      %c0_11 = arith.constant 0 : index
      %c0_12 = arith.constant 0 : index
      %19 = vector.load %arg6[%c0_11, %c0_12] : memref<128x1xf32, #tpu.memory_space<vmem>>, vector<128x1xf32>
      tpu.vector_store %arg6[%c0_11, %c0_12], %18 {strides = array<i32>} : memref<128x1xf32, #tpu.memory_space<vmem>>, vector<128x1xf32>,
    } else {
    }
    %c128_i32 = arith.constant 128 : i32
    %3 = arith.muli %arg1, %c128_i32 : i32
    %4 = tpu.assume_multiple %3, 128 : i32
    %c0 = arith.constant 0 : index
    %5 = arith.index_cast %4 : i32 to index
    %6 = vector.load %arg3[%c0, %5] : memref<128x128xbf16, #tpu.memory_space<vmem>>, vector<128x128xbf16>
    %c0_1 = arith.constant 0 : index
    %c0_2 = arith.constant 0 : index
    %7 = vector.load %arg2[%c0_1, %c0_2] : memref<128x128xbf16, #tpu.memory_space<vmem>>, vector<128x128xbf16>
    %cst = arith.constant dense<0.000000e+00> : vector<128x128xf32>
    %8 = tpu.matmul %7, %6, %cst {dimension_numbers = #tpu.dot_dimension_numbers<[1], [0], [0], [1], [0, 0, 1, 1], [], []>} : vector<128x128xbf16>, vector<128x128xbf16>, vector<128x128xf32> -> vector<128x128xf32>
    %c0_3 = arith.constant 0 : index
    %c0_4 = arith.constant 0 : index
    %9 = vector.load %arg6[%c0_3, %c0_4] : memref<128x1xf32, #tpu.memory_space<vmem>>, vector<128x1xf32>
    %10 = math.exp %8 : vector<128x128xf32>
    %cst_5 = arith.constant dense<0.000000e+00> : vector<128xf32>
    %11 = vector.multi_reduction <add>, %10, %cst_5 [1] : vector<128x128xf32> to vector<128xf32>
    %12 = vector.shape_cast %11 : vector<128xf32> to vector<128x1xf32>
    %13 = arith.addf %9, %12 : vector<128x1xf32>
    %c0_6 = arith.constant 0 : index
    %c0_7 = arith.constant 0 : index
    %14 = vector.load %arg6[%c0_6, %c0_7] : memref<128x1xf32, #tpu.memory_space<vmem>>, vector<128x1xf32>
    tpu.vector_store %arg6[%c0_6, %c0_7], %13 {strides = array<i32>} : memref<128x1xf32, #tpu.memory_space<vmem>>, vector<128x1xf32>,
    %c0_i32_8 = arith.constant 0 : i32
    %15 = arith.cmpi eq, %arg1, %c0_i32_8 : i32
    %16 = arith.extui %15 : i1 to i32
    %c0_i32_9 = arith.constant 0 : i32
    %17 = arith.cmpi ne, %16, %c0_i32_9 : i32
    scf.if %17 {
      %c0_10 = arith.constant 0 : index
      %c0_11 = arith.constant 0 : index
      %18 = vector.load %arg4[%c0_10, %c0_11] : memref<128x1xf32, #tpu.memory_space<vmem>>, vector<128x1xf32>
      %c0_12 = arith.constant 0 : index
      %c0_13 = arith.constant 0 : index
      %19 = vector.load %arg6[%c0_12, %c0_13] : memref<128x1xf32, #tpu.memory_space<vmem>>, vector<128x1xf32>
      %20 = arith.subf %19, %18 : vector<128x1xf32>
      %cst_14 = arith.constant 103.389053 : f32
      %21 = vector.broadcast %cst_14 : f32 to vector<128x1xf32>
      %22 = arith.subf %20, %21 : vector<128x1xf32>
      %cst_15 = arith.constant -1.500000e+01 : f32
      %23 = vector.broadcast %cst_15 : f32 to vector<128x1xf32>
      %24 = arith.mulf %23, %18 : vector<128x1xf32>
      %25 = arith.addf %24, %22 : vector<128x1xf32>
      %cst_16 = arith.constant 2.000000e+00 : f32
      %26 = vector.broadcast %cst_16 : f32 to vector<128x1xf32>
      %27 = arith.mulf %25, %26 : vector<128x1xf32>
      %cst_17 = arith.constant 4.06005859 : f32
      %28 = vector.broadcast %cst_17 : f32 to vector<128x1xf32>
      %29 = arith.maximumf %27, %28 : vector<128x1xf32>
      %30 = arith.addf %18, %29 : vector<128x1xf32>
      %31 = arith.divf %30, %18 : vector<128x1xf32>
      %32 = math.log %31 : vector<128x1xf32>
      %c0_18 = arith.constant 0 : index
      %c0_19 = arith.constant 0 : index
      %33 = vector.load %arg5[%c0_18, %c0_19] : memref<128x1xf32, #tpu.memory_space<vmem>>, vector<128x1xf32>
      tpu.vector_store %arg5[%c0_18, %c0_19], %32 {strides = array<i32>} : memref<128x1xf32, #tpu.memory_space<vmem>>, vector<128x1xf32>,
    } else {
    }
    return
  }
  func.func @transform_0(%arg0: i32, %arg1: i32) -> (i32, i32) {
    %c0_i32 = arith.constant 0 : i32
    %c0_i32_0 = arith.constant 0 : i32
    return %arg0, %c0_i32 : i32, i32
  }
  func.func @transform_1(%arg0: i32, %arg1: i32) -> (i32, i32) {
    %c0_i32 = arith.constant 0 : i32
    %c0_i32_0 = arith.constant 0 : i32
    %c0_i32_1 = arith.constant 0 : i32
    return %c0_i32, %c0_i32_0 : i32, i32
  }
  func.func @transform_2(%arg0: i32, %arg1: i32) -> (i32, i32) {
    %c0_i32 = arith.constant 0 : i32
    %c0_i32_0 = arith.constant 0 : i32
    return %arg0, %c0_i32 : i32, i32
  }
  func.func @transform_3(%arg0: i32, %arg1: i32) -> (i32, i32) {
    %c0_i32 = arith.constant 0 : i32
    %c0_i32_0 = arith.constant 0 : i32
    return %arg0, %c0_i32 : i32, i32
  }
}

</mosaic_0001>

<llo_original>
// kernel: tpu_custom_call.1
$region0: #{tpu_custom_call.1}
  #allocation0 [shape = 'u32[]', space=smem, size = 0x4, offset = 0x4, fixed_abs, tag = 'smem constant byte address 0x4 - core index']
  #allocation1 [shape = 'u32[144,128]{1,0:T(1,128)}', space=vmem, size = 0x12000, scoped, tag = 'internal scratch']
  #allocation2 [shape = 'f32[128,1]{1,0:T(8,128)}', space=vmem, size = 0x10000, scoped, tag = 'scratch operand']
  %s0 = inlined_call_operand.vmem [shape: bf16[128,128], index: 0, kind: input, shape index: {}]
  %s1 = inlined_call_operand.vmem [shape: bf16[128,128], index: 1, kind: input, shape index: {}]
  %s2 = inlined_call_operand.vmem [shape: f32[128,1], index: 2, kind: input, shape index: {}]
  %s3 = inlined_call_operand.vmem [shape: f32[128,1], index: 3, kind: output, shape index: {}]
  %s4 = sld [smem:[#allocation0]]
  $region30: #{tpu_custom_call.1} parent=0
    _
  %s6 = ssub.s32 1, %s4
  %s7 = scalar_select 0, %s6, %s4
  // Predicated region
  $region2: #{tpu_custom_call.1} parent=0 // pred_check
    _
  $region3: #{tpu_custom_call.1} parent=0 // pred_check_branch
    %9 = sbr.rel (0) target = $region5
  $region4: #{tpu_custom_call.1} parent=0 // pred_region
    _
  $region5: #{tpu_custom_call.1} parent=0 // pred_fallthru
    _
  // Predicated region
  $region6: #{tpu_custom_call.1} parent=0 // pred_check
    _
  $region7: #{tpu_custom_call.1} parent=0 // pred_check_branch
    %11 = sbr.rel (0) target = $region9
  $region8: #{tpu_custom_call.1} parent=0 // pred_region
    _
  $region9: #{tpu_custom_call.1} parent=0 // pred_fallthru
    _
  // Predicated region
  $region10: #{tpu_custom_call.1} parent=0 // pred_check
    _
  $region11: #{tpu_custom_call.1} parent=0 // pred_check_branch
    %13 = sbr.rel (0) target = $region13
  $region12: #{tpu_custom_call.1} parent=0 // pred_region
    _
  $region13: #{tpu_custom_call.1} parent=0 // pred_fallthru
    _
  %p15 = scmp.eq.s32.totalorder 0, 0
  // Predicated region
  $region14: #{tpu_custom_call.1} parent=0 // pred_check
    %p16 = pneg %p15
  $region15: #{tpu_custom_call.1} parent=0 // pred_check_branch
    %18 = sbr.rel (%p16) target = $region17
  $region16: #{tpu_custom_call.1} parent=0 // pred_region
    %vm19 = vcmask 7168
    %20 = vst.msk [vmem:[#allocation2] sm:$0xff] %vm19, 0.0
    %21 = vst.msk [vmem:[#allocation2 + $0x8] sm:$0xff] %vm19, 0.0
    %22 = vst.msk [vmem:[#allocation2 + $0x10] sm:$0xff] %vm19, 0.0
    %23 = vst.msk [vmem:[#allocation2 + $0x18] sm:$0xff] %vm19, 0.0
    %24 = vst.msk [vmem:[#allocation2 + $0x20] sm:$0xff] %vm19, 0.0
    %25 = vst.msk [vmem:[#allocation2 + $0x28] sm:$0xff] %vm19, 0.0
    %26 = vst.msk [vmem:[#allocation2 + $0x30] sm:$0xff] %vm19, 0.0
    %27 = vst.msk [vmem:[#allocation2 + $0x38] sm:$0xff] %vm19, 0.0
    %28 = vst.msk [vmem:[#allocation2 + $0x40] sm:$0xff] %vm19, 0.0
    %29 = vst.msk [vmem:[#allocation2 + $0x48] sm:$0xff] %vm19, 0.0
    %30 = vst.msk [vmem:[#allocation2 + $0x50] sm:$0xff] %vm19, 0.0
    %31 = vst.msk [vmem:[#allocation2 + $0x58] sm:$0xff] %vm19, 0.0
    %32 = vst.msk [vmem:[#allocation2 + $0x60] sm:$0xff] %vm19, 0.0
    %33 = vst.msk [vmem:[#allocation2 + $0x68] sm:$0xff] %vm19, 0.0
    %34 = vst.msk [vmem:[#allocation2 + $0x70] sm:$0xff] %vm19, 0.0
    %35 = vst.msk [vmem:[#allocation2 + $0x78] sm:$0xff] %vm19, 0.0
  $region17: #{tpu_custom_call.1} parent=0 // pred_fallthru
    _
  %s36 = smul.u32 0, 128
  %s37 = sshra.s32 %s36, 7
  %s38 = sand.u32 %s36, 127
  %s39 = smul.addr %s37, 4
  %s40 = scalar_lea.vmem %s1, %s39
  %v41 = vld [vmem:[%s40] sm:$0xf]
  %v42 = vld [vmem:[%s40 + $0x4] sm:$0xf]
  %v43 = vld [vmem:[%s40 + $0x8] sm:$0xf]
  %v44 = vld [vmem:[%s40 + $0xc] sm:$0xf]
  %v45 = vld [vmem:[%s40 + $0x10] sm:$0xf]
  %v46 = vld [vmem:[%s40 + $0x14] sm:$0xf]
  %v47 = vld [vmem:[%s40 + $0x18] sm:$0xf]
  %v48 = vld [vmem:[%s40 + $0x1c] sm:$0xf]
  %v49 = vld [vmem:[%s40 + $0x20] sm:$0xf]
  %v50 = vld [vmem:[%s40 + $0x24] sm:$0xf]
  %v51 = vld [vmem:[%s40 + $0x28] sm:$0xf]
  %v52 = vld [vmem:[%s40 + $0x2c] sm:$0xf]
  %v53 = vld [vmem:[%s40 + $0x30] sm:$0xf]
  %v54 = vld [vmem:[%s40 + $0x34] sm:$0xf]
  %v55 = vld [vmem:[%s40 + $0x38] sm:$0xf]
  %v56 = vld [vmem:[%s40 + $0x3c] sm:$0xf]
  %v57 = vld [vmem:[%s0] sm:$0xf]
  %v58 = vld [vmem:[%s0 + $0x4] sm:$0xf]
  %v59 = vld [vmem:[%s0 + $0x8] sm:$0xf]
  %v60 = vld [vmem:[%s0 + $0xc] sm:$0xf]
  %v61 = vld [vmem:[%s0 + $0x10] sm:$0xf]
  %v62 = vld [vmem:[%s0 + $0x14] sm:$0xf]
  %v63 = vld [vmem:[%s0 + $0x18] sm:$0xf]
  %v64 = vld [vmem:[%s0 + $0x1c] sm:$0xf]
  %v65 = vld [vmem:[%s0 + $0x20] sm:$0xf]
  %v66 = vld [vmem:[%s0 + $0x24] sm:$0xf]
  %v67 = vld [vmem:[%s0 + $0x28] sm:$0xf]
  %v68 = vld [vmem:[%s0 + $0x2c] sm:$0xf]
  %v69 = vld [vmem:[%s0 + $0x30] sm:$0xf]
  %v70 = vld [vmem:[%s0 + $0x34] sm:$0xf]
  %v71 = vld [vmem:[%s0 + $0x38] sm:$0xf]
  %v72 = vld [vmem:[%s0 + $0x3c] sm:$0xf]
  %v89 = vunpack.c.l.b16 %v57
  %v90 = vunpack.c.l.b16 %v58
  %v91 = vunpack.c.l.b16 %v59
  %v92 = vunpack.c.l.b16 %v60
  %v93 = vunpack.c.l.b16 %v61
  %v94 = vunpack.c.l.b16 %v62
  %v95 = vunpack.c.l.b16 %v63
  %v96 = vunpack.c.l.b16 %v64
  %v97 = vunpack.c.l.b16 %v65
  %v98 = vunpack.c.l.b16 %v66
  %v99 = vunpack.c.l.b16 %v67
  %v100 = vunpack.c.l.b16 %v68
  %v101 = vunpack.c.l.b16 %v69
  %v102 = vunpack.c.l.b16 %v70
  %v103 = vunpack.c.l.b16 %v71
  %v104 = vunpack.c.l.b16 %v72
  %v105 = vpack.c.b16 %v90, %v89
  %v106 = vpack.c.b16 %v92, %v91
  %v107 = vpack.c.b16 %v94, %v93
  %v108 = vpack.c.b16 %v96, %v95
  %v109 = vpack.c.b16 %v98, %v97
  %v110 = vpack.c.b16 %v100, %v99
  %v111 = vpack.c.b16 %v102, %v101
  %v112 = vpack.c.b16 %v104, %v103
  %v137 = vunpack.c.l.b16 %v41
  %v138 = vunpack.c.l.b16 %v42
  %v139 = vunpack.c.l.b16 %v43
  %v140 = vunpack.c.l.b16 %v44
  %v141 = vunpack.c.l.b16 %v45
  %v142 = vunpack.c.l.b16 %v46
  %v143 = vunpack.c.l.b16 %v47
  %v144 = vunpack.c.l.b16 %v48
  %v145 = vunpack.c.l.b16 %v49
  %v146 = vunpack.c.l.b16 %v50
  %v147 = vunpack.c.l.b16 %v51
  %v148 = vunpack.c.l.b16 %v52
  %v149 = vunpack.c.l.b16 %v53
  %v150 = vunpack.c.l.b16 %v54
  %v151 = vunpack.c.l.b16 %v55
  %v152 = vunpack.c.l.b16 %v56
  %v153 = vpack.c.b16 %v138, %v137
  %v154 = vpack.c.b16 %v140, %v139
  %v155 = vpack.c.b16 %v142, %v141
  %v156 = vpack.c.b16 %v144, %v143
  %v157 = vpack.c.b16 %v146, %v145
  %v158 = vpack.c.b16 %v148, %v147
  %v159 = vpack.c.b16 %v150, %v149
  %v160 = vpack.c.b16 %v152, %v151
  %169 = vmatprep.subr.bf16.mxu0 0
  %170 = vmatpush1.bf16.msra.mxu0 %v153
  %171 = vmatprep.subr.bf16.mxu0 0
  %172 = vmatpush1.bf16.msra.mxu0 %v154
  %173 = vmatprep.subr.bf16.mxu0 0
  %174 = vmatpush1.bf16.msra.mxu0 %v155
  %175 = vmatprep.subr.bf16.mxu0 0
  %176 = vmatpush1.bf16.msra.mxu0 %v156
  %177 = vmatprep.subr.bf16.mxu0 0
  %178 = vmatpush1.bf16.msra.mxu0 %v157
  %179 = vmatprep.subr.bf16.mxu0 0
  %180 = vmatpush1.bf16.msra.mxu0 %v158
  %181 = vmatprep.subr.bf16.mxu0 0
  %182 = vmatpush1.bf16.msra.mxu0 %v159
  %183 = vmatprep.subr.bf16.mxu0 0
  %184 = vmatpush1.bf16.msra.mxu0 %v160
  %185 = vmatprep.subr.bf16.mxu0 0
  %186 = vmatpush1.bf16.msra.mxu0 0
  %187 = vmatprep.subr.bf16.mxu0 0
  %188 = vmatpush1.bf16.msra.mxu0 0
  %189 = vmatprep.subr.bf16.mxu0 0
  %190 = vmatpush1.bf16.msra.mxu0 0
  %191 = vmatprep.subr.bf16.mxu0 0
  %192 = vmatpush1.bf16.msra.mxu0 0
  %193 = vmatprep.subr.bf16.mxu0 0
  %194 = vmatpush1.bf16.msra.mxu0 0
  %195 = vmatprep.subr.bf16.mxu0 0
  %196 = vmatpush1.bf16.msra.mxu0 0
  %197 = vmatprep.subr.bf16.mxu0 0
  %198 = vmatpush1.bf16.msra.mxu0 0
  %199 = vmatprep.subr.bf16.mxu0 0
  %200 = vmatpush1.bf16.msra.mxu0 0
  %201 = vmatprep.mubr.bf16.mxu0 0
  %202 = vmatmul.mubr.bf16.gmra.mrb[0].mxu0 %v105
  %v203 = vpop.f32.mrb[0].mxu0
  %v204 = vadd.f32 0.0, %v203
  %v205 = vpop.f32.mrb[0].mxu0
  %v206 = vpop.f32.mrb[0].mxu0
  %v207 = vadd.f32 0.0, %v206
  %v208 = vpop.f32.mrb[0].mxu0
  %209 = vmatprep.mubr.bf16.mxu0 0
  %210 = vmatmul.mubr.bf16.gmra.mrb[0].mxu0 %v106
  %v211 = vpop.f32.mrb[0].mxu0
  %v212 = vadd.f32 0.0, %v211
  %v213 = vpop.f32.mrb[0].mxu0
  %v214 = vpop.f32.mrb[0].mxu0
  %v215 = vadd.f32 0.0, %v214
  %v216 = vpop.f32.mrb[0].mxu0
  %217 = vmatprep.mubr.bf16.mxu0 0
  %218 = vmatmul.mubr.bf16.gmra.mrb[0].mxu0 %v107
  %v219 = vpop.f32.mrb[0].mxu0
  %v220 = vadd.f32 0.0, %v219
  %v221 = vpop.f32.mrb[0].mxu0
  %v222 = vpop.f32.mrb[0].mxu0
  %v223 = vadd.f32 0.0, %v222
  %v224 = vpop.f32.mrb[0].mxu0
  %225 = vmatprep.mubr.bf16.mxu0 0
  %226 = vmatmul.mubr.bf16.gmra.mrb[0].mxu0 %v108
  %v227 = vpop.f32.mrb[0].mxu0
  %v228 = vadd.f32 0.0, %v227
  %v229 = vpop.f32.mrb[0].mxu0
  %v230 = vpop.f32.mrb[0].mxu0
  %v231 = vadd.f32 0.0, %v230
  %v232 = vpop.f32.mrb[0].mxu0
  %233 = vmatprep.mubr.bf16.mxu0 0
  %234 = vmatmul.mubr.bf16.gmra.mrb[0].mxu0 %v109
  %v235 = vpop.f32.mrb[0].mxu0
  %v236 = vadd.f32 0.0, %v235
  %v237 = vpop.f32.mrb[0].mxu0
  %v238 = vpop.f32.mrb[0].mxu0
  %v239 = vadd.f32 0.0, %v238
  %v240 = vpop.f32.mrb[0].mxu0
  %241 = vmatprep.mubr.bf16.mxu0 0
  %242 = vmatmul.mubr.bf16.gmra.mrb[0].mxu0 %v110
  %v243 = vpop.f32.mrb[0].mxu0
  %v244 = vadd.f32 0.0, %v243
  %v245 = vpop.f32.mrb[0].mxu0
  %v246 = vpop.f32.mrb[0].mxu0
  %v247 = vadd.f32 0.0, %v246
  %v248 = vpop.f32.mrb[0].mxu0
  %249 = vmatprep.mubr.bf16.mxu0 0
  %250 = vmatmul.mubr.bf16.gmra.mrb[0].mxu0 %v111
  %v251 = vpop.f32.mrb[0].mxu0
  %v252 = vadd.f32 0.0, %v251
  %v253 = vpop.f32.mrb[0].mxu0
  %v254 = vpop.f32.mrb[0].mxu0
  %v255 = vadd.f32 0.0, %v254
  %v256 = vpop.f32.mrb[0].mxu0
  %257 = vmatprep.mubr.bf16.mxu0 0
  %258 = vmatmul.mubr.bf16.gmra.mrb[0].mxu0 %v112
  %v259 = vpop.f32.mrb[0].mxu0
  %v260 = vadd.f32 0.0, %v259
  %v261 = vpop.f32.mrb[0].mxu0
  %v262 = vpop.f32.mrb[0].mxu0
  %v263 = vadd.f32 0.0, %v262
  %v264 = vpop.f32.mrb[0].mxu0
  %265 = vdwg.mxu0
  %v266 = vld [vmem:[#allocation2] sm:$0xff]
  %v267 = vld [vmem:[#allocation2 + $0x8] sm:$0xff]
  %v268 = vld [vmem:[#allocation2 + $0x10] sm:$0xff]
  %v269 = vld [vmem:[#allocation2 + $0x18] sm:$0xff]
  %v270 = vld [vmem:[#allocation2 + $0x20] sm:$0xff]
  %v271 = vld [vmem:[#allocation2 + $0x28] sm:$0xff]
  %v272 = vld [vmem:[#allocation2 + $0x30] sm:$0xff]
  %v273 = vld [vmem:[#allocation2 + $0x38] sm:$0xff]
  %v274 = vld [vmem:[#allocation2 + $0x40] sm:$0xff]
  %v275 = vld [vmem:[#allocation2 + $0x48] sm:$0xff]
  %v276 = vld [vmem:[#allocation2 + $0x50] sm:$0xff]
  %v277 = vld [vmem:[#allocation2 + $0x58] sm:$0xff]
  %v278 = vld [vmem:[#allocation2 + $0x60] sm:$0xff]
  %v279 = vld [vmem:[#allocation2 + $0x68] sm:$0xff]
  %v280 = vld [vmem:[#allocation2 + $0x70] sm:$0xff]
  %v281 = vld [vmem:[#allocation2 + $0x78] sm:$0xff]
  %v282 = vmul.f32 %v204, 1.442695
  %v283 = vpow.pop %v282
  %v284 = vmul.f32 %v207, 1.442695
  %v285 = vpow.pop %v284
  %v286 = vmul.f32 %v212, 1.442695
  %v287 = vpow.pop %v286
  %v288 = vmul.f32 %v215, 1.442695
  %v289 = vpow.pop %v288
  %v290 = vmul.f32 %v220, 1.442695
  %v291 = vpow.pop %v290
  %v292 = vmul.f32 %v223, 1.442695
  %v293 = vpow.pop %v292
  %v294 = vmul.f32 %v228, 1.442695
  %v295 = vpow.pop %v294
  %v296 = vmul.f32 %v231, 1.442695
  %v297 = vpow.pop %v296
  %v298 = vmul.f32 %v236, 1.442695
  %v299 = vpow.pop %v298
  %v300 = vmul.f32 %v239, 1.442695
  %v301 = vpow.pop %v300
  %v302 = vmul.f32 %v244, 1.442695
  %v303 = vpow.pop %v302
  %v304 = vmul.f32 %v247, 1.442695
  %v305 = vpow.pop %v304
  %v306 = vmul.f32 %v252, 1.442695
  %v307 = vpow.pop %v306
  %v308 = vmul.f32 %v255, 1.442695
  %v309 = vpow.pop %v308
  %v310 = vmul.f32 %v260, 1.442695
  %v311 = vpow.pop %v310
  %v312 = vmul.f32 %v263, 1.442695
  %v313 = vpow.pop %v312
  %314 = vadd.xlane.f32.xlu0 %v283
  %v315 = vpop.xlane.xlu0 %314
  %316 = vadd.xlane.f32.xlu0 %v285
  %v317 = vpop.xlane.xlu0 %316
  %318 = vadd.xlane.f32.xlu0 %v287
  %v319 = vpop.xlane.xlu0 %318
  %320 = vadd.xlane.f32.xlu0 %v289
  %v321 = vpop.xlane.xlu0 %320
  %322 = vadd.xlane.f32.xlu0 %v291
  %v323 = vpop.xlane.xlu0 %322
  %324 = vadd.xlane.f32.xlu0 %v293
  %v325 = vpop.xlane.xlu0 %324
  %326 = vadd.xlane.f32.xlu0 %v295
  %v327 = vpop.xlane.xlu0 %326
  %328 = vadd.xlane.f32.xlu0 %v297
  %v329 = vpop.xlane.xlu0 %328
  %330 = vadd.xlane.f32.xlu0 %v299
  %v331 = vpop.xlane.xlu0 %330
  %332 = vadd.xlane.f32.xlu0 %v301
  %v333 = vpop.xlane.xlu0 %332
  %334 = vadd.xlane.f32.xlu0 %v303
  %v335 = vpop.xlane.xlu0 %334
  %336 = vadd.xlane.f32.xlu0 %v305
  %v337 = vpop.xlane.xlu0 %336
  %338 = vadd.xlane.f32.xlu0 %v307
  %v339 = vpop.xlane.xlu0 %338
  %340 = vadd.xlane.f32.xlu0 %v309
  %v341 = vpop.xlane.xlu0 %340
  %342 = vadd.xlane.f32.xlu0 %v311
  %v343 = vpop.xlane.xlu0 %342
  %344 = vadd.xlane.f32.xlu0 %v313
  %v345 = vpop.xlane.xlu0 %344
  %v346 = vadd.f32 %v266, %v315
  %v347 = vadd.f32 %v267, %v317
  %v348 = vadd.f32 %v268, %v319
  %v349 = vadd.f32 %v269, %v321
  %v350 = vadd.f32 %v270, %v323
  %v351 = vadd.f32 %v271, %v325
  %v352 = vadd.f32 %v272, %v327
  %v353 = vadd.f32 %v273, %v329
  %v354 = vadd.f32 %v274, %v331
  %v355 = vadd.f32 %v275, %v333
  %v356 = vadd.f32 %v276, %v335
  %v357 = vadd.f32 %v277, %v337
  %v358 = vadd.f32 %v278, %v339
  %v359 = vadd.f32 %v279, %v341
  %v360 = vadd.f32 %v280, %v343
  %v361 = vadd.f32 %v281, %v345
  %vm362 = vcmask 7168
  %363 = vst.msk [vmem:[#allocation2] sm:$0xff] %vm362, %v346
  %364 = vst.msk [vmem:[#allocation2 + $0x8] sm:$0xff] %vm362, %v347
  %365 = vst.msk [vmem:[#allocation2 + $0x10] sm:$0xff] %vm362, %v348
  %366 = vst.msk [vmem:[#allocation2 + $0x18] sm:$0xff] %vm362, %v349
  %367 = vst.msk [vmem:[#allocation2 + $0x20] sm:$0xff] %vm362, %v350
  %368 = vst.msk [vmem:[#allocation2 + $0x28] sm:$0xff] %vm362, %v351
  %369 = vst.msk [vmem:[#allocation2 + $0x30] sm:$0xff] %vm362, %v352
  %370 = vst.msk [vmem:[#allocation2 + $0x38] sm:$0xff] %vm362, %v353
  %371 = vst.msk [vmem:[#allocation2 + $0x40] sm:$0xff] %vm362, %v354
  %372 = vst.msk [vmem:[#allocation2 + $0x48] sm:$0xff] %vm362, %v355
  %373 = vst.msk [vmem:[#allocation2 + $0x50] sm:$0xff] %vm362, %v356
  %374 = vst.msk [vmem:[#allocation2 + $0x58] sm:$0xff] %vm362, %v357
  %375 = vst.msk [vmem:[#allocation2 + $0x60] sm:$0xff] %vm362, %v358
  %376 = vst.msk [vmem:[#allocation2 + $0x68] sm:$0xff] %vm362, %v359
  %377 = vst.msk [vmem:[#allocation2 + $0x70] sm:$0xff] %vm362, %v360
  %378 = vst.msk [vmem:[#allocation2 + $0x78] sm:$0xff] %vm362, %v361
  // Predicated region
  $region18: #{tpu_custom_call.1} parent=0 // pred_check
    %p379 = pneg %p15
  $region19: #{tpu_custom_call.1} parent=0 // pred_check_branch
    %381 = sbr.rel (%p379) target = $region21
  $region20: #{tpu_custom_call.1} parent=0 // pred_region
    %v382 = vld [vmem:[%s2] sm:$0xff]
    %v383 = vld [vmem:[%s2 + $0x8] sm:$0xff]
    %v384 = vld [vmem:[%s2 + $0x10] sm:$0xff]
    %v385 = vld [vmem:[%s2 + $0x18] sm:$0xff]
    %v386 = vld [vmem:[%s2 + $0x20] sm:$0xff]
    %v387 = vld [vmem:[%s2 + $0x28] sm:$0xff]
    %v388 = vld [vmem:[%s2 + $0x30] sm:$0xff]
    %v389 = vld [vmem:[%s2 + $0x38] sm:$0xff]
    %v390 = vld [vmem:[%s2 + $0x40] sm:$0xff]
    %v391 = vld [vmem:[%s2 + $0x48] sm:$0xff]
    %v392 = vld [vmem:[%s2 + $0x50] sm:$0xff]
    %v393 = vld [vmem:[%s2 + $0x58] sm:$0xff]
    %v394 = vld [vmem:[%s2 + $0x60] sm:$0xff]
    %v395 = vld [vmem:[%s2 + $0x68] sm:$0xff]
    %v396 = vld [vmem:[%s2 + $0x70] sm:$0xff]
    %v397 = vld [vmem:[%s2 + $0x78] sm:$0xff]
    %v398 = vld [vmem:[#allocation2] sm:$0xff]
    %v399 = vld [vmem:[#allocation2 + $0x8] sm:$0xff]
    %v400 = vld [vmem:[#allocation2 + $0x10] sm:$0xff]
    %v401 = vld [vmem:[#allocation2 + $0x18] sm:$0xff]
    %v402 = vld [vmem:[#allocation2 + $0x20] sm:$0xff]
    %v403 = vld [vmem:[#allocation2 + $0x28] sm:$0xff]
    %v404 = vld [vmem:[#allocation2 + $0x30] sm:$0xff]
    %v405 = vld [vmem:[#allocation2 + $0x38] sm:$0xff]
    %v406 = vld [vmem:[#allocation2 + $0x40] sm:$0xff]
    %v407 = vld [vmem:[#allocation2 + $0x48] sm:$0xff]
    %v408 = vld [vmem:[#allocation2 + $0x50] sm:$0xff]
    %v409 = vld [vmem:[#allocation2 + $0x58] sm:$0xff]
    %v410 = vld [vmem:[#allocation2 + $0x60] sm:$0xff]
    %v411 = vld [vmem:[#allocation2 + $0x68] sm:$0xff]
    %v412 = vld [vmem:[#allocation2 + $0x70] sm:$0xff]
    %v413 = vld [vmem:[#allocation2 + $0x78] sm:$0xff]
    %v414 = vsub.f32 %v398, %v382
    %v415 = vsub.f32 %v399, %v383
    %v416 = vsub.f32 %v400, %v384
    %v417 = vsub.f32 %v401, %v385
    %v418 = vsub.f32 %v402, %v386
    %v419 = vsub.f32 %v403, %v387
    %v420 = vsub.f32 %v404, %v388
    %v421 = vsub.f32 %v405, %v389
    %v422 = vsub.f32 %v406, %v390
    %v423 = vsub.f32 %v407, %v391
    %v424 = vsub.f32 %v408, %v392
    %v425 = vsub.f32 %v409, %v393
    %v426 = vsub.f32 %v410, %v394
    %v427 = vsub.f32 %v411, %v395
    %v428 = vsub.f32 %v412, %v396
    %v429 = vsub.f32 %v413, %v397
    %v430 = vsub.f32 %v414, 103.38905
    %v431 = vsub.f32 %v415, 103.38905
    %v432 = vsub.f32 %v416, 103.38905
    %v433 = vsub.f32 %v417, 103.38905
    %v434 = vsub.f32 %v418, 103.38905
    %v435 = vsub.f32 %v419, 103.38905
    %v436 = vsub.f32 %v420, 103.38905
    %v437 = vsub.f32 %v421, 103.38905
    %v438 = vsub.f32 %v422, 103.38905
    %v439 = vsub.f32 %v423, 103.38905
    %v440 = vsub.f32 %v424, 103.38905
    %v441 = vsub.f32 %v425, 103.38905
    %v442 = vsub.f32 %v426, 103.38905
    %v443 = vsub.f32 %v427, 103.38905
    %v444 = vsub.f32 %v428, 103.38905
    %v445 = vsub.f32 %v429, 103.38905
    %v446 = vmul.f32 %v382, -15.0
    %v447 = vmul.f32 %v383, -15.0
    %v448 = vmul.f32 %v384, -15.0
    %v449 = vmul.f32 %v385, -15.0
    %v450 = vmul.f32 %v386, -15.0
    %v451 = vmul.f32 %v387, -15.0
    %v452 = vmul.f32 %v388, -15.0
    %v453 = vmul.f32 %v389, -15.0
    %v454 = vmul.f32 %v390, -15.0
    %v455 = vmul.f32 %v391, -15.0
    %v456 = vmul.f32 %v392, -15.0
    %v457 = vmul.f32 %v393, -15.0
    %v458 = vmul.f32 %v394, -15.0
    %v459 = vmul.f32 %v395, -15.0
    %v460 = vmul.f32 %v396, -15.0
    %v461 = vmul.f32 %v397, -15.0
    %v462 = vadd.f32 %v446, %v430
    %v463 = vadd.f32 %v447, %v431
    %v464 = vadd.f32 %v448, %v432
    %v465 = vadd.f32 %v449, %v433
    %v466 = vadd.f32 %v450, %v434
    %v467 = vadd.f32 %v451, %v435
    %v468 = vadd.f32 %v452, %v436
    %v469 = vadd.f32 %v453, %v437
    %v470 = vadd.f32 %v454, %v438
    %v471 = vadd.f32 %v455, %v439
    %v472 = vadd.f32 %v456, %v440
    %v473 = vadd.f32 %v457, %v441
    %v474 = vadd.f32 %v458, %v442
    %v475 = vadd.f32 %v459, %v443
    %v476 = vadd.f32 %v460, %v444
    %v477 = vadd.f32 %v461, %v445
    %v478 = vmul.f32 %v462, 2.0
    %v479 = vmul.f32 %v463, 2.0
    %v480 = vmul.f32 %v464, 2.0
    %v481 = vmul.f32 %v465, 2.0
    %v482 = vmul.f32 %v466, 2.0
    %v483 = vmul.f32 %v467, 2.0
    %v484 = vmul.f32 %v468, 2.0
    %v485 = vmul.f32 %v469, 2.0
    %v486 = vmul.f32 %v470, 2.0
    %v487 = vmul.f32 %v471, 2.0
    %v488 = vmul.f32 %v472, 2.0
    %v489 = vmul.f32 %v473, 2.0
    %v490 = vmul.f32 %v474, 2.0
    %v491 = vmul.f32 %v475, 2.0
    %v492 = vmul.f32 %v476, 2.0
    %v493 = vmul.f32 %v477, 2.0
    %v494 = vmax.f32 %v478, 4.0600586
    %v495 = vmax.f32 %v479, 4.0600586
    %v496 = vmax.f32 %v480, 4.0600586
    %v497 = vmax.f32 %v481, 4.0600586
    %v498 = vmax.f32 %v482, 4.0600586
    %v499 = vmax.f32 %v483, 4.0600586
    %v500 = vmax.f32 %v484, 4.0600586
    %v501 = vmax.f32 %v485, 4.0600586
    %v502 = vmax.f32 %v486, 4.0600586
    %v503 = vmax.f32 %v487, 4.0600586
    %v504 = vmax.f32 %v488, 4.0600586
    %v505 = vmax.f32 %v489, 4.0600586
    %v506 = vmax.f32 %v490, 4.0600586
    %v507 = vmax.f32 %v491, 4.0600586
    %v508 = vmax.f32 %v492, 4.0600586
    %v509 = vmax.f32 %v493, 4.0600586
    %v510 = vadd.f32 %v382, %v494
    %v511 = vadd.f32 %v383, %v495
    %v512 = vadd.f32 %v384, %v496
    %v513 = vadd.f32 %v385, %v497
    %v514 = vadd.f32 %v386, %v498
    %v515 = vadd.f32 %v387, %v499
    %v516 = vadd.f32 %v388, %v500
    %v517 = vadd.f32 %v389, %v501
    %v518 = vadd.f32 %v390, %v502
    %v519 = vadd.f32 %v391, %v503
    %v520 = vadd.f32 %v392, %v504
    %v521 = vadd.f32 %v393, %v505
    %v522 = vadd.f32 %v394, %v506
    %v523 = vadd.f32 %v395, %v507
    %v524 = vadd.f32 %v396, %v508
    %v525 = vadd.f32 %v397, %v509
    %v526 = vrcp.pop %v382
    %v527 = vmul.f32 %v510, %v526
    %v528 = vrcp.pop %v383
    %v529 = vmul.f32 %v511, %v528
    %v530 = vrcp.pop %v384
    %v531 = vmul.f32 %v512, %v530
    %v532 = vrcp.pop %v385
    %v533 = vmul.f32 %v513, %v532
    %v534 = vrcp.pop %v386
    %v535 = vmul.f32 %v514, %v534
    %v536 = vrcp.pop %v387
    %v537 = vmul.f32 %v515, %v536
    %v538 = vrcp.pop %v388
    %v539 = vmul.f32 %v516, %v538
    %v540 = vrcp.pop %v389
    %v541 = vmul.f32 %v517, %v540
    %v542 = vrcp.pop %v390
    %v543 = vmul.f32 %v518, %v542
    %v544 = vrcp.pop %v391
    %v545 = vmul.f32 %v519, %v544
    %v546 = vrcp.pop %v392
    %v547 = vmul.f32 %v520, %v546
    %v548 = vrcp.pop %v393
    %v549 = vmul.f32 %v521, %v548
    %v550 = vrcp.pop %v394
    %v551 = vmul.f32 %v522, %v550
    %v552 = vrcp.pop %v395
    %v553 = vmul.f32 %v523, %v552
    %v554 = vrcp.pop %v396
    %v555 = vmul.f32 %v524, %v554
    %v556 = vrcp.pop %v397
    %v557 = vmul.f32 %v525, %v556
    %v558 = vlog2.pop %v527
    %v559 = vmul.f32 %v558, 0.6931472
    %v560 = vlog2.pop %v529
    %v561 = vmul.f32 %v560, 0.6931472
    %v562 = vlog2.pop %v531
    %v563 = vmul.f32 %v562, 0.6931472
    %v564 = vlog2.pop %v533
    %v565 = vmul.f32 %v564, 0.6931472
    %v566 = vlog2.pop %v535
    %v567 = vmul.f32 %v566, 0.6931472
    %v568 = vlog2.pop %v537
    %v569 = vmul.f32 %v568, 0.6931472
    %v570 = vlog2.pop %v539
    %v571 = vmul.f32 %v570, 0.6931472
    %v572 = vlog2.pop %v541
    %v573 = vmul.f32 %v572, 0.6931472
    %v574 = vlog2.pop %v543
    %v575 = vmul.f32 %v574, 0.6931472
    %v576 = vlog2.pop %v545
    %v577 = vmul.f32 %v576, 0.6931472
    %v578 = vlog2.pop %v547
    %v579 = vmul.f32 %v578, 0.6931472
    %v580 = vlog2.pop %v549
    %v581 = vmul.f32 %v580, 0.6931472
    %v582 = vlog2.pop %v551
    %v583 = vmul.f32 %v582, 0.6931472
    %v584 = vlog2.pop %v553
    %v585 = vmul.f32 %v584, 0.6931472
    %v586 = vlog2.pop %v555
    %v587 = vmul.f32 %v586, 0.6931472
    %v588 = vlog2.pop %v557
    %v589 = vmul.f32 %v588, 0.6931472
    %590 = vst.msk [vmem:[%s3] sm:$0xff] %vm362, %v559
    %591 = vst.msk [vmem:[%s3 + $0x8] sm:$0xff] %vm362, %v561
    %592 = vst.msk [vmem:[%s3 + $0x10] sm:$0xff] %vm362, %v563
    %593 = vst.msk [vmem:[%s3 + $0x18] sm:$0xff] %vm362, %v565
    %594 = vst.msk [vmem:[%s3 + $0x20] sm:$0xff] %vm362, %v567
    %595 = vst.msk [vmem:[%s3 + $0x28] sm:$0xff] %vm362, %v569
    %596 = vst.msk [vmem:[%s3 + $0x30] sm:$0xff] %vm362, %v571
    %597 = vst.msk [vmem:[%s3 + $0x38] sm:$0xff] %vm362, %v573
    %598 = vst.msk [vmem:[%s3 + $0x40] sm:$0xff] %vm362, %v575
    %599 = vst.msk [vmem:[%s3 + $0x48] sm:$0xff] %vm362, %v577
    %600 = vst.msk [vmem:[%s3 + $0x50] sm:$0xff] %vm362, %v579
    %601 = vst.msk [vmem:[%s3 + $0x58] sm:$0xff] %vm362, %v581
    %602 = vst.msk [vmem:[%s3 + $0x60] sm:$0xff] %vm362, %v583
    %603 = vst.msk [vmem:[%s3 + $0x68] sm:$0xff] %vm362, %v585
    %604 = vst.msk [vmem:[%s3 + $0x70] sm:$0xff] %vm362, %v587
    %605 = vst.msk [vmem:[%s3 + $0x78] sm:$0xff] %vm362, %v589
  $region21: #{tpu_custom_call.1} parent=0 // pred_fallthru
    _
  // Predicated region
  $region22: #{tpu_custom_call.1} parent=0 // pred_check
    _
  $region23: #{tpu_custom_call.1} parent=0 // pred_check_branch
    %607 = sbr.rel (0) target = $region25
  $region24: #{tpu_custom_call.1} parent=0 // pred_region
    _
  $region25: #{tpu_custom_call.1} parent=0 // pred_fallthru
    _
  // Predicated region
  $region26: #{tpu_custom_call.1} parent=0 // pred_check
    _
  $region27: #{tpu_custom_call.1} parent=0 // pred_check_branch
    %609 = sbr.rel (0) target = $region29
  $region28: #{tpu_custom_call.1} parent=0 // pred_region
    _
  $region29: #{tpu_custom_call.1} parent=0 // pred_fallthru
    _

</llo_original>
